<compile_context>
chip_gen: v7x
topology: tpu7x:2x2x1
jax: 0.10.0
libtpu: 0.0.40
codegen_flags: <defaults>
</compile_context>

<pallas_src>
import functools

import jax
import jax.numpy as jnp
from jax.experimental import pallas as pl
from jax.experimental.pallas import tpu as pltpu


WEIGHT_DTYPE = jnp.bfloat16   # MXU operand dtype; accumulation stays f32.
                              # Set to jnp.float32 for bit-closer numerics.
LANE_PAD = 128                # lane-dense padding of the output (N) feature dim


def _round_up(n, m):
    return ((n + m - 1) // m) * m


# ---------------------------------------------------------------------------
# Fused MLP kernel: whole network per invocation, layers unrolled statically.
# ---------------------------------------------------------------------------
def _mlp_kernel(x_ref, w_ref, b_ref, o_ref, *, num_hidden_layers, kdim):
    """x_ref: (B, Kp) f32; w_ref: (L+1, Kp, Np) WEIGHT_DTYPE (BN folded);
    b_ref: (L+1, 1, Np) f32 (BN folded); o_ref: (B, Np) f32 (logit in col 0)."""
    act = x_ref[...]                                      # (B, Kp) f32

    for l in range(num_hidden_layers):                    # static unroll
        wl = w_ref[l]                                     # (Kp, Np)
        y = jnp.dot(act.astype(wl.dtype), wl,
                    preferred_element_type=jnp.float32) + b_ref[l]
        # LeakyReLU(0.01) in f32 (safe on v5e: no bf16 VPU needed).
        y = jnp.where(y > 0.0, y, 0.01 * y)
        # Dropout: identity in eval mode.
        act = y[:, :kdim]                                 # (B, Kp)

    # Final Linear(H, 1), embedded as column 0 of the Np-wide padded slab.
    wl = w_ref[num_hidden_layers]
    y = jnp.dot(act.astype(wl.dtype), wl,
                preferred_element_type=jnp.float32) + b_ref[num_hidden_layers]
    o_ref[...] = y.astype(o_ref.dtype)


@functools.partial(jax.jit, static_argnames=("num_hidden_layers", "kdim"))
def forward(x_pad, w_stack, b_stack, *, num_hidden_layers, kdim):
    """x_pad: (B, Kp); w_stack: (L+1, Kp, Np); b_stack: (L+1, 1, Np).

    Returns (B, 1) logits.
    """
    B, _ = x_pad.shape
    Np = w_stack.shape[-1]

    out = pl.pallas_call(
        functools.partial(_mlp_kernel,
                          num_hidden_layers=num_hidden_layers, kdim=kdim),
        out_shape=jax.ShapeDtypeStruct((B, Np), jnp.float32),
        in_specs=[
            pl.BlockSpec(memory_space=pltpu.MemorySpace.VMEM),   # x (whole)
            pl.BlockSpec(memory_space=pltpu.MemorySpace.VMEM),   # weight stack
            pl.BlockSpec(memory_space=pltpu.MemorySpace.VMEM),   # bias stack
        ],
        out_specs=pl.BlockSpec(memory_space=pltpu.MemorySpace.VMEM),
        compiler_params=pltpu.CompilerParams(
            # Tiny footprint (<64 KiB); explicit limit keeps the same config
            # safe across v5e/v6e/v7x default scoped-VMEM differences.
            vmem_limit_bytes=16 * 1024 * 1024,
        ),
    )(x_pad, w_stack, b_stack)

    return out[:, :1]


# ---------------------------------------------------------------------------
# Parameter construction (mirrors the module's __init__ shapes / inits)
# ---------------------------------------------------------------------------
def init_params(key, input_size, hidden_size, num_layers):
    params = {"layers": []}
    for i in range(num_layers):
        in_size = input_size if i == 0 else hidden_size
        key, kw = jax.random.split(key)
        # kaiming_uniform for leaky_relu: bound = sqrt(6 / ((1 + a^2) * fan_in))
        a = 0.01
        bound = jnp.sqrt(6.0 / ((1.0 + a * a) * in_size))
        w = jax.random.uniform(kw, (in_size, hidden_size), jnp.float32,
                               minval=-bound, maxval=bound)
        b = jnp.zeros((1, hidden_size), jnp.float32)
        # BatchNorm1d params (eval mode): gamma=1, beta=0, mean=0, var=1
        gamma = jnp.ones((hidden_size,), jnp.float32)
        beta = jnp.zeros((hidden_size,), jnp.float32)
        running_mean = jnp.zeros((hidden_size,), jnp.float32)
        running_var = jnp.ones((hidden_size,), jnp.float32)
        eps = 1e-5
        scale = (gamma / jnp.sqrt(running_var + eps)).reshape(1, hidden_size)
        shift = (beta - running_mean * scale[0]).reshape(1, hidden_size)
        params["layers"].append((w, b, scale, shift))

    # output layer: Linear(hidden_size, 1), xavier_uniform
    key, kw = jax.random.split(key)
    bound = jnp.sqrt(6.0 / (hidden_size + 1))
    w_out = jax.random.uniform(kw, (hidden_size, 1), jnp.float32,
                               minval=-bound, maxval=bound)
    b_out = jnp.zeros((1, 1), jnp.float32)
    params["out"] = (w_out, b_out)
    return params


def build_stacked_params(params, input_size, hidden_size, kpad, npad):
    """Fold BN into weights/bias, pad K to `kpad` (mult of 8) and N to `npad`
    (lane-dense 128), stack layers, cast weights to WEIGHT_DTYPE."""
    Ws, Bs = [], []
    for (w, b, scale, shift) in params["layers"]:
        in_size = w.shape[0]
        w_f = w * scale                       # (in, H): fold BN scale into weights
        b_f = b * scale + shift               # (1, H): fold bias + BN shift
        W_pad = jnp.zeros((kpad, npad), jnp.float32).at[:in_size, :hidden_size].set(w_f)
        B_pad = jnp.zeros((1, npad), jnp.float32).at[:, :hidden_size].set(b_f)
        Ws.append(W_pad)
        Bs.append(B_pad)

    w_out, b_out = params["out"]              # (H, 1), (1, 1)
    W_pad = jnp.zeros((kpad, npad), jnp.float32).at[:hidden_size, :1].set(w_out)
    B_pad = jnp.zeros((1, npad), jnp.float32).at[:, :1].set(b_out)
    Ws.append(W_pad)
    Bs.append(B_pad)

    w_stack = jnp.stack(Ws, axis=0).astype(WEIGHT_DTYPE)   # (L+1, Kp, Np)
    b_stack = jnp.stack(Bs, axis=0)                        # (L+1, 1, Np) f32
    return w_stack, b_stack


# Pure-JAX reference (unpadded, unfused, f32) for correctness checking
def forward_ref(params, x):
    h = x
    for (w, b, scale, shift) in params["layers"]:
        y = h @ w + b
        y = y * scale + shift
        h = jnp.where(y > 0, y, 0.01 * y)
    w_out, b_out = params["out"]
    return h @ w_out + b_out


if __name__ == "__main__":
    # Small shapes consistent with the tabular model.
    batch = 8
    input_size = 20
    hidden_size = 32
    num_layers = 3

    Kp = _round_up(max(input_size, hidden_size), 8)   # contraction pad (32)
    Np = LANE_PAD                                     # lane-dense output pad (128)

    key = jax.random.PRNGKey(0)
    key, kx = jax.random.split(key)
    x = jax.random.normal(kx, (batch, input_size), jnp.float32)

    params = init_params(key, input_size, hidden_size, num_layers)
    w_stack, b_stack = build_stacked_params(params, input_size, hidden_size, Kp, Np)
    x_pad = jnp.zeros((batch, Kp), jnp.float32).at[:, :input_size].set(x)

    out = forward(x_pad, w_stack, b_stack,
                  num_hidden_layers=num_layers, kdim=Kp)
    out = jax.block_until_ready(out)

    ref = forward_ref(params, x)
    assert out.shape == (batch, 1), out.shape
    tol = 5e-2 if WEIGHT_DTYPE == jnp.bfloat16 else 1e-4
    assert jnp.allclose(out, ref, atol=tol, rtol=tol), (out, ref)

    print("KERNEL_OK")
</pallas_src>

<mosaic_0001>
module attributes {stable_mosaic.version = 11 : i64} {
  func.func @_mlp_kernel(%arg0: memref<8x32xf32, #tpu.memory_space<vmem>>, %arg1: memref<4x32x128xbf16, #tpu.memory_space<vmem>>, %arg2: memref<4x1x128xf32, #tpu.memory_space<vmem>>, %arg3: memref<8x128xf32, #tpu.memory_space<vmem>>) attributes {dimension_semantics = [], scalar_prefetch = 0 : i64, scratch_operands = 0 : i64, tpu.core_type = #tpu.core_type<tc>} {
    %c0 = arith.constant 0 : index
    %c0_0 = arith.constant 0 : index
    %0 = vector.load %arg0[%c0, %c0_0] : memref<8x32xf32, #tpu.memory_space<vmem>>, vector<8x32xf32>
    %c0_1 = arith.constant 0 : index
    %c0_2 = arith.constant 0 : index
    %c0_3 = arith.constant 0 : index
    %1 = vector.load %arg1[%c0_1, %c0_2, %c0_3] : memref<4x32x128xbf16, #tpu.memory_space<vmem>>, vector<1x32x128xbf16>
    %2 = vector.shape_cast %1 : vector<1x32x128xbf16> to vector<32x128xbf16>
    %3 = arith.truncf %0 : vector<8x32xf32> to vector<8x32xbf16>
    %cst = arith.constant dense<0.000000e+00> : vector<8x128xf32>
    %4 = tpu.matmul %3, %2, %cst {dimension_numbers = #tpu.dot_dimension_numbers<[1], [0], [0], [1], [0, 0, 1, 1], [], []>} : vector<8x32xbf16>, vector<32x128xbf16>, vector<8x128xf32> -> vector<8x128xf32>
    %c0_4 = arith.constant 0 : index
    %c0_5 = arith.constant 0 : index
    %c0_6 = arith.constant 0 : index
    %5 = vector.load %arg2[%c0_4, %c0_5, %c0_6] : memref<4x1x128xf32, #tpu.memory_space<vmem>>, vector<1x1x128xf32>
    %6 = vector.shape_cast %5 : vector<1x1x128xf32> to vector<1x128xf32>
    %7 = vector.broadcast %6 : vector<1x128xf32> to vector<8x128xf32>
    %8 = arith.addf %4, %7 : vector<8x128xf32>
    %cst_7 = arith.constant 0.000000e+00 : f32
    %9 = vector.broadcast %cst_7 : f32 to vector<8x128xf32>
    %10 = arith.cmpf ogt, %8, %9 : vector<8x128xf32>
    %cst_8 = arith.constant 0.00999999977 : f32
    %11 = vector.broadcast %cst_8 : f32 to vector<8x128xf32>
    %12 = arith.mulf %11, %8 : vector<8x128xf32>
    %13 = arith.select %10, %8, %12 : vector<8x128xi1>, vector<8x128xf32>
    %14 = vector.extract_strided_slice %13 {offsets = [0, 0], sizes = [8, 32], strides = [1, 1]} : vector<8x128xf32> to vector<8x32xf32>
    %c1 = arith.constant 1 : index
    %c0_9 = arith.constant 0 : index
    %c0_10 = arith.constant 0 : index
    %15 = vector.load %arg1[%c1, %c0_9, %c0_10] : memref<4x32x128xbf16, #tpu.memory_space<vmem>>, vector<1x32x128xbf16>
    %16 = vector.shape_cast %15 : vector<1x32x128xbf16> to vector<32x128xbf16>
    %17 = arith.truncf %14 : vector<8x32xf32> to vector<8x32xbf16>
    %cst_11 = arith.constant dense<0.000000e+00> : vector<8x128xf32>
    %18 = tpu.matmul %17, %16, %cst_11 {dimension_numbers = #tpu.dot_dimension_numbers<[1], [0], [0], [1], [0, 0, 1, 1], [], []>} : vector<8x32xbf16>, vector<32x128xbf16>, vector<8x128xf32> -> vector<8x128xf32>
    %c1_12 = arith.constant 1 : index
    %c0_13 = arith.constant 0 : index
    %c0_14 = arith.constant 0 : index
    %19 = vector.load %arg2[%c1_12, %c0_13, %c0_14] : memref<4x1x128xf32, #tpu.memory_space<vmem>>, vector<1x1x128xf32>
    %20 = vector.shape_cast %19 : vector<1x1x128xf32> to vector<1x128xf32>
    %21 = vector.broadcast %20 : vector<1x128xf32> to vector<8x128xf32>
    %22 = arith.addf %18, %21 : vector<8x128xf32>
    %cst_15 = arith.constant 0.000000e+00 : f32
    %23 = vector.broadcast %cst_15 : f32 to vector<8x128xf32>
    %24 = arith.cmpf ogt, %22, %23 : vector<8x128xf32>
    %cst_16 = arith.constant 0.00999999977 : f32
    %25 = vector.broadcast %cst_16 : f32 to vector<8x128xf32>
    %26 = arith.mulf %25, %22 : vector<8x128xf32>
    %27 = arith.select %24, %22, %26 : vector<8x128xi1>, vector<8x128xf32>
    %28 = vector.extract_strided_slice %27 {offsets = [0, 0], sizes = [8, 32], strides = [1, 1]} : vector<8x128xf32> to vector<8x32xf32>
    %c2 = arith.constant 2 : index
    %c0_17 = arith.constant 0 : index
    %c0_18 = arith.constant 0 : index
    %29 = vector.load %arg1[%c2, %c0_17, %c0_18] : memref<4x32x128xbf16, #tpu.memory_space<vmem>>, vector<1x32x128xbf16>
    %30 = vector.shape_cast %29 : vector<1x32x128xbf16> to vector<32x128xbf16>
    %31 = arith.truncf %28 : vector<8x32xf32> to vector<8x32xbf16>
    %cst_19 = arith.constant dense<0.000000e+00> : vector<8x128xf32>
    %32 = tpu.matmul %31, %30, %cst_19 {dimension_numbers = #tpu.dot_dimension_numbers<[1], [0], [0], [1], [0, 0, 1, 1], [], []>} : vector<8x32xbf16>, vector<32x128xbf16>, vector<8x128xf32> -> vector<8x128xf32>
    %c2_20 = arith.constant 2 : index
    %c0_21 = arith.constant 0 : index
    %c0_22 = arith.constant 0 : index
    %33 = vector.load %arg2[%c2_20, %c0_21, %c0_22] : memref<4x1x128xf32, #tpu.memory_space<vmem>>, vector<1x1x128xf32>
    %34 = vector.shape_cast %33 : vector<1x1x128xf32> to vector<1x128xf32>
    %35 = vector.broadcast %34 : vector<1x128xf32> to vector<8x128xf32>
    %36 = arith.addf %32, %35 : vector<8x128xf32>
    %cst_23 = arith.constant 0.000000e+00 : f32
    %37 = vector.broadcast %cst_23 : f32 to vector<8x128xf32>
    %38 = arith.cmpf ogt, %36, %37 : vector<8x128xf32>
    %cst_24 = arith.constant 0.00999999977 : f32
    %39 = vector.broadcast %cst_24 : f32 to vector<8x128xf32>
    %40 = arith.mulf %39, %36 : vector<8x128xf32>
    %41 = arith.select %38, %36, %40 : vector<8x128xi1>, vector<8x128xf32>
    %42 = vector.extract_strided_slice %41 {offsets = [0, 0], sizes = [8, 32], strides = [1, 1]} : vector<8x128xf32> to vector<8x32xf32>
    %c3 = arith.constant 3 : index
    %c0_25 = arith.constant 0 : index
    %c0_26 = arith.constant 0 : index
    %43 = vector.load %arg1[%c3, %c0_25, %c0_26] : memref<4x32x128xbf16, #tpu.memory_space<vmem>>, vector<1x32x128xbf16>
    %44 = vector.shape_cast %43 : vector<1x32x128xbf16> to vector<32x128xbf16>
    %45 = arith.truncf %42 : vector<8x32xf32> to vector<8x32xbf16>
    %cst_27 = arith.constant dense<0.000000e+00> : vector<8x128xf32>
    %46 = tpu.matmul %45, %44, %cst_27 {dimension_numbers = #tpu.dot_dimension_numbers<[1], [0], [0], [1], [0, 0, 1, 1], [], []>} : vector<8x32xbf16>, vector<32x128xbf16>, vector<8x128xf32> -> vector<8x128xf32>
    %c3_28 = arith.constant 3 : index
    %c0_29 = arith.constant 0 : index
    %c0_30 = arith.constant 0 : index
    %47 = vector.load %arg2[%c3_28, %c0_29, %c0_30] : memref<4x1x128xf32, #tpu.memory_space<vmem>>, vector<1x1x128xf32>
    %48 = vector.shape_cast %47 : vector<1x1x128xf32> to vector<1x128xf32>
    %49 = vector.broadcast %48 : vector<1x128xf32> to vector<8x128xf32>
    %50 = arith.addf %46, %49 : vector<8x128xf32>
    %c0_31 = arith.constant 0 : index
    %c0_32 = arith.constant 0 : index
    %51 = vector.load %arg3[%c0_31, %c0_32] : memref<8x128xf32, #tpu.memory_space<vmem>>, vector<8x128xf32>
    tpu.vector_store %arg3[%c0_31, %c0_32], %50 {strides = array<i32>} : memref<8x128xf32, #tpu.memory_space<vmem>>, vector<8x128xf32>,
    return
  }
}

</mosaic_0001>

<llo_original>
// kernel: forward.1
$region0: #{forward.1}
  #allocation0 [shape = 'u32[]', space=smem, size = 0x4, offset = 0x4, fixed_abs, tag = 'smem constant byte address 0x4 - core index']
  #allocation1 [shape = 'u32[144,128]{1,0:T(1,128)}', space=vmem, size = 0x12000, scoped, tag = 'internal scratch']
  %s0 = inlined_call_operand.hbm [shape: f32[8,32], index: 0, kind: input, shape index: {}]
  %s1 = inlined_call_operand.hbm [shape: bf16[4,32,128], index: 1, kind: input, shape index: {}]
  %s2 = inlined_call_operand.vmem [shape: f32[4,1,128], index: 2, kind: input, shape index: {}]
  %s3 = inlined_call_operand.vmem [shape: f32[8,128], index: 3, kind: output, shape index: {}]
  %s4 = sld [smem:[#allocation0]]
  $region30: #{forward.1} parent=0
    _
  %s6 = ssub.s32 1, %s4
  %s7 = scalar_select 0, %s6, %s4
  $region1: #{forward.1} parent=0
    #allocation2 [shape = 'u8[4096]{0}', space=vmem, size = 0x1000, scoped, tag = 'input window, operand 0, single buffered']
    #allocation3 [shape = 's32[1]{0}', space=sflag, size = 0x4, scoped, tag = 'scoped memory for forward.1']
    #allocation4 [shape = 'u8[32768]{0}', space=vmem, size = 0x8000, scoped, tag = 'input window, operand 1, single buffered']
    #allocation5 [shape = 's32[1]{0}', space=sflag, size = 0x4, scoped, tag = 'scoped memory for forward.1']
    %8 = vsyncpa [#allocation3], 0
    %9 = vsyncpa [#allocation5], 0
    // Predicated region
    $region2: #{forward.1} parent=1 // pred_check
      _
    $region3: #{forward.1} parent=1 // pred_check_branch
      %11 = sbr.rel (0) target = $region5
    $region4: #{forward.1} parent=1 // pred_region
      %s13 = ssub.s32 128, 128
      %14 = vsyncadd [#allocation3], %s13
      %s16 = sshll.u32 [#allocation2], 4
      %s17 = int_to_ptr.vmem [resolvable:$true] %s16
      %19 = dma.hbm_to_vmem [thread:$0]  %s0, 128, %s17, [#allocation3]
    $region5: #{forward.1} parent=1 // pred_fallthru
      _
    // Predicated region
    $region6: #{forward.1} parent=1 // pred_check
      _
    $region7: #{forward.1} parent=1 // pred_check_branch
      %21 = sbr.rel (0) target = $region9
    $region8: #{forward.1} parent=1 // pred_region
      %s23 = ssub.s32 1024, 1024
      %24 = vsyncadd [#allocation5], %s23
      %s25 = sshll.u32 [#allocation4], 4
      %s26 = int_to_ptr.vmem [resolvable:$true] %s25
      %31 = dma.hbm_to_vmem [thread:$0]  %s1, 1024, %s26, [#allocation5], 64, 64, 4
    $region9: #{forward.1} parent=1 // pred_fallthru
      _
    // Predicated region
    $region10: #{forward.1} parent=1 // pred_check
      _
    $region11: #{forward.1} parent=1 // pred_check_branch
      %33 = sbr.rel (0) target = $region13
    $region12: #{forward.1} parent=1 // pred_region
      _
    $region13: #{forward.1} parent=1 // pred_fallthru
      _
    // Predicated region
    $region14: #{forward.1} parent=1 // pred_check
      _
    $region15: #{forward.1} parent=1 // pred_check_branch
      %35 = sbr.rel (0) target = $region17
    $region16: #{forward.1} parent=1 // pred_region
      %36 = dma.done [#allocation3], 128
    $region17: #{forward.1} parent=1 // pred_fallthru
      _
    // Predicated region
    $region18: #{forward.1} parent=1 // pred_check
      _
    $region19: #{forward.1} parent=1 // pred_check_branch
      %38 = sbr.rel (0) target = $region21
    $region20: #{forward.1} parent=1 // pred_region
      %39 = dma.done [#allocation5], 1024
    $region21: #{forward.1} parent=1 // pred_fallthru
      _
    %v41 = vld [vmem:[#allocation2] sm:$0xff]
    %v42 = vld [vmem:[#allocation4] sm:$0xf]
    %v43 = vld [vmem:[#allocation4 + $0x4] sm:$0xf]
    %v44 = vld [vmem:[#allocation4 + $0x8] sm:$0xf]
    %v45 = vld [vmem:[#allocation4 + $0xc] sm:$0xf]
    %v46 = vpack.c.bf16 %v41, %v41
    %v47 = vld [vmem:[%s2] sm:$0x1]
    %v49 = vlaneseq
    %v50 = vshrl.u32 %v49, 7
    %v51 = vsub.s32 0, %v50
    %v52 = vrot.slane %v47, %v51
    %v58 = vunpack.c.l.b16 %v42
    %v59 = vunpack.c.l.b16 %v43
    %v60 = vunpack.c.l.b16 %v44
    %v61 = vunpack.c.l.b16 %v45
    %v62 = vpack.c.b16 %v59, %v58
    %v63 = vpack.c.b16 %v61, %v60
    %vm66 = vcmask 261120
    %v68 = vsel %vm66, %v46, 0
    %70 = vmatprep.subr.bf16.mxu0 0
    %71 = vmatpush1.bf16.msra.mxu0 %v62
    %72 = vmatprep.subr.bf16.mxu0 0
    %73 = vmatpush1.bf16.msra.mxu0 %v63
    %74 = vmatprep.subr.bf16.mxu0 0
    %75 = vmatpush1.bf16.msra.mxu0 0
    %76 = vmatprep.subr.bf16.mxu0 0
    %77 = vmatpush1.bf16.msra.mxu0 0
    %78 = vmatprep.subr.bf16.mxu0 0
    %79 = vmatpush1.bf16.msra.mxu0 0
    %80 = vmatprep.subr.bf16.mxu0 0
    %81 = vmatpush1.bf16.msra.mxu0 0
    %82 = vmatprep.subr.bf16.mxu0 0
    %83 = vmatpush1.bf16.msra.mxu0 0
    %84 = vmatprep.subr.bf16.mxu0 0
    %85 = vmatpush1.bf16.msra.mxu0 0
    %86 = vmatprep.subr.bf16.mxu0 0
    %87 = vmatpush1.bf16.msra.mxu0 0
    %88 = vmatprep.subr.bf16.mxu0 0
    %89 = vmatpush1.bf16.msra.mxu0 0
    %90 = vmatprep.subr.bf16.mxu0 0
    %91 = vmatpush1.bf16.msra.mxu0 0
    %92 = vmatprep.subr.bf16.mxu0 0
    %93 = vmatpush1.bf16.msra.mxu0 0
    %94 = vmatprep.subr.bf16.mxu0 0
    %95 = vmatpush1.bf16.msra.mxu0 0
    %96 = vmatprep.subr.bf16.mxu0 0
    %97 = vmatpush1.bf16.msra.mxu0 0
    %98 = vmatprep.subr.bf16.mxu0 0
    %99 = vmatpush1.bf16.msra.mxu0 0
    %100 = vmatprep.subr.bf16.mxu0 0
    %101 = vmatpush1.bf16.msra.mxu0 0
    %102 = vmatprep.mubr.bf16.mxu0 0
    %103 = vmatmul.mubr.bf16.gmra.mrb[0].mxu0 %v68
    %v104 = vpop.f32.mrb[0].mxu0
    %v105 = vadd.f32 %v52, %v104
    %v106 = vpop.f32.mrb[0].mxu0
    %v107 = vpop.f32.mrb[0].mxu0
    %v108 = vpop.f32.mrb[0].mxu0
    %109 = vdwg.mxu0
    %vm110 = vcmp.gt.f32.partialorder %v105, 0.0
    %v111 = vmul.f32 %v105, 0.01
    %v112 = vsel %vm110, %v105, %v111
    %s113 = scalar_lea.vmem [#allocation4], 16
    %v114 = vld [vmem:[%s113] sm:$0xf]
    %v115 = vld [vmem:[%s113 + $0x4] sm:$0xf]
    %v116 = vld [vmem:[%s113 + $0x8] sm:$0xf]
    %v117 = vld [vmem:[%s113 + $0xc] sm:$0xf]
    %v118 = vpack.c.bf16 %v112, %v112
    %s119 = scalar_lea.vmem %s2, 1
    %v120 = vld [vmem:[%s119] sm:$0x1]
    %v122 = vlaneseq
    %v123 = vshrl.u32 %v122, 7
    %v124 = vsub.s32 0, %v123
    %v125 = vrot.slane %v120, %v124
    %v131 = vunpack.c.l.b16 %v114
    %v132 = vunpack.c.l.b16 %v115
    %v133 = vunpack.c.l.b16 %v116
    %v134 = vunpack.c.l.b16 %v117
    %v135 = vpack.c.b16 %v132, %v131
    %v136 = vpack.c.b16 %v134, %v133
    %v140 = vsel %vm66, %v118, 0
    %142 = vmatprep.subr.bf16.mxu0 0
    %143 = vmatpush1.bf16.msra.mxu0 %v135
    %144 = vmatprep.subr.bf16.mxu0 0
    %145 = vmatpush1.bf16.msra.mxu0 %v136
    %146 = vmatprep.subr.bf16.mxu0 0
    %147 = vmatpush1.bf16.msra.mxu0 0
    %148 = vmatprep.subr.bf16.mxu0 0
    %149 = vmatpush1.bf16.msra.mxu0 0
    %150 = vmatprep.subr.bf16.mxu0 0
    %151 = vmatpush1.bf16.msra.mxu0 0
    %152 = vmatprep.subr.bf16.mxu0 0
    %153 = vmatpush1.bf16.msra.mxu0 0
    %154 = vmatprep.subr.bf16.mxu0 0
    %155 = vmatpush1.bf16.msra.mxu0 0
    %156 = vmatprep.subr.bf16.mxu0 0
    %157 = vmatpush1.bf16.msra.mxu0 0
    %158 = vmatprep.subr.bf16.mxu0 0
    %159 = vmatpush1.bf16.msra.mxu0 0
    %160 = vmatprep.subr.bf16.mxu0 0
    %161 = vmatpush1.bf16.msra.mxu0 0
    %162 = vmatprep.subr.bf16.mxu0 0
    %163 = vmatpush1.bf16.msra.mxu0 0
    %164 = vmatprep.subr.bf16.mxu0 0
    %165 = vmatpush1.bf16.msra.mxu0 0
    %166 = vmatprep.subr.bf16.mxu0 0
    %167 = vmatpush1.bf16.msra.mxu0 0
    %168 = vmatprep.subr.bf16.mxu0 0
    %169 = vmatpush1.bf16.msra.mxu0 0
    %170 = vmatprep.subr.bf16.mxu0 0
    %171 = vmatpush1.bf16.msra.mxu0 0
    %172 = vmatprep.subr.bf16.mxu0 0
    %173 = vmatpush1.bf16.msra.mxu0 0
    %174 = vmatprep.mubr.bf16.mxu0 0
    %175 = vmatmul.mubr.bf16.gmra.mrb[0].mxu0 %v140
    %v176 = vpop.f32.mrb[0].mxu0
    %v177 = vadd.f32 %v125, %v176
    %v178 = vpop.f32.mrb[0].mxu0
    %v179 = vpop.f32.mrb[0].mxu0
    %v180 = vpop.f32.mrb[0].mxu0
    %181 = vdwg.mxu0
    %vm182 = vcmp.gt.f32.partialorder %v177, 0.0
    %v183 = vmul.f32 %v177, 0.01
    %v184 = vsel %vm182, %v177, %v183
    %s185 = scalar_lea.vmem [#allocation4], 32
    %v186 = vld [vmem:[%s185] sm:$0xf]
    %v187 = vld [vmem:[%s185 + $0x4] sm:$0xf]
    %v188 = vld [vmem:[%s185 + $0x8] sm:$0xf]
    %v189 = vld [vmem:[%s185 + $0xc] sm:$0xf]
    %v190 = vpack.c.bf16 %v184, %v184
    %s191 = scalar_lea.vmem %s2, 2
    %v192 = vld [vmem:[%s191] sm:$0x1]
    %v194 = vlaneseq
    %v195 = vshrl.u32 %v194, 7
    %v196 = vsub.s32 0, %v195
    %v197 = vrot.slane %v192, %v196
    %v203 = vunpack.c.l.b16 %v186
    %v204 = vunpack.c.l.b16 %v187
    %v205 = vunpack.c.l.b16 %v188
    %v206 = vunpack.c.l.b16 %v189
    %v207 = vpack.c.b16 %v204, %v203
    %v208 = vpack.c.b16 %v206, %v205
    %v212 = vsel %vm66, %v190, 0
    %214 = vmatprep.subr.bf16.mxu0 0
    %215 = vmatpush1.bf16.msra.mxu0 %v207
    %216 = vmatprep.subr.bf16.mxu0 0
    %217 = vmatpush1.bf16.msra.mxu0 %v208
    %218 = vmatprep.subr.bf16.mxu0 0
    %219 = vmatpush1.bf16.msra.mxu0 0
    %220 = vmatprep.subr.bf16.mxu0 0
    %221 = vmatpush1.bf16.msra.mxu0 0
    %222 = vmatprep.subr.bf16.mxu0 0
    %223 = vmatpush1.bf16.msra.mxu0 0
    %224 = vmatprep.subr.bf16.mxu0 0
    %225 = vmatpush1.bf16.msra.mxu0 0
    %226 = vmatprep.subr.bf16.mxu0 0
    %227 = vmatpush1.bf16.msra.mxu0 0
    %228 = vmatprep.subr.bf16.mxu0 0
    %229 = vmatpush1.bf16.msra.mxu0 0
    %230 = vmatprep.subr.bf16.mxu0 0
    %231 = vmatpush1.bf16.msra.mxu0 0
    %232 = vmatprep.subr.bf16.mxu0 0
    %233 = vmatpush1.bf16.msra.mxu0 0
    %234 = vmatprep.subr.bf16.mxu0 0
    %235 = vmatpush1.bf16.msra.mxu0 0
    %236 = vmatprep.subr.bf16.mxu0 0
    %237 = vmatpush1.bf16.msra.mxu0 0
    %238 = vmatprep.subr.bf16.mxu0 0
    %239 = vmatpush1.bf16.msra.mxu0 0
    %240 = vmatprep.subr.bf16.mxu0 0
    %241 = vmatpush1.bf16.msra.mxu0 0
    %242 = vmatprep.subr.bf16.mxu0 0
    %243 = vmatpush1.bf16.msra.mxu0 0
    %244 = vmatprep.subr.bf16.mxu0 0
    %245 = vmatpush1.bf16.msra.mxu0 0
    %246 = vmatprep.mubr.bf16.mxu0 0
    %247 = vmatmul.mubr.bf16.gmra.mrb[0].mxu0 %v212
    %v248 = vpop.f32.mrb[0].mxu0
    %v249 = vadd.f32 %v197, %v248
    %v250 = vpop.f32.mrb[0].mxu0
    %v251 = vpop.f32.mrb[0].mxu0
    %v252 = vpop.f32.mrb[0].mxu0
    %253 = vdwg.mxu0
    %vm254 = vcmp.gt.f32.partialorder %v249, 0.0
    %v255 = vmul.f32 %v249, 0.01
    %v256 = vsel %vm254, %v249, %v255
    %s257 = scalar_lea.vmem [#allocation4], 48
    %v258 = vld [vmem:[%s257] sm:$0xf]
    %v259 = vld [vmem:[%s257 + $0x4] sm:$0xf]
    %v260 = vld [vmem:[%s257 + $0x8] sm:$0xf]
    %v261 = vld [vmem:[%s257 + $0xc] sm:$0xf]
    %v262 = vpack.c.bf16 %v256, %v256
    %s263 = scalar_lea.vmem %s2, 3
    %v264 = vld [vmem:[%s263] sm:$0x1]
    %v266 = vlaneseq
    %v267 = vshrl.u32 %v266, 7
    %v268 = vsub.s32 0, %v267
    %v269 = vrot.slane %v264, %v268
    %v275 = vunpack.c.l.b16 %v258
    %v276 = vunpack.c.l.b16 %v259
    %v277 = vunpack.c.l.b16 %v260
    %v278 = vunpack.c.l.b16 %v261
    %v279 = vpack.c.b16 %v276, %v275
    %v280 = vpack.c.b16 %v278, %v277
    %v284 = vsel %vm66, %v262, 0
    %286 = vmatprep.subr.bf16.mxu0 0
    %287 = vmatpush1.bf16.msra.mxu0 %v279
    %288 = vmatprep.subr.bf16.mxu0 0
    %289 = vmatpush1.bf16.msra.mxu0 %v280
    %290 = vmatprep.subr.bf16.mxu0 0
    %291 = vmatpush1.bf16.msra.mxu0 0
    %292 = vmatprep.subr.bf16.mxu0 0
    %293 = vmatpush1.bf16.msra.mxu0 0
    %294 = vmatprep.subr.bf16.mxu0 0
    %295 = vmatpush1.bf16.msra.mxu0 0
    %296 = vmatprep.subr.bf16.mxu0 0
    %297 = vmatpush1.bf16.msra.mxu0 0
    %298 = vmatprep.subr.bf16.mxu0 0
    %299 = vmatpush1.bf16.msra.mxu0 0
    %300 = vmatprep.subr.bf16.mxu0 0
    %301 = vmatpush1.bf16.msra.mxu0 0
    %302 = vmatprep.subr.bf16.mxu0 0
    %303 = vmatpush1.bf16.msra.mxu0 0
    %304 = vmatprep.subr.bf16.mxu0 0
    %305 = vmatpush1.bf16.msra.mxu0 0
    %306 = vmatprep.subr.bf16.mxu0 0
    %307 = vmatpush1.bf16.msra.mxu0 0
    %308 = vmatprep.subr.bf16.mxu0 0
    %309 = vmatpush1.bf16.msra.mxu0 0
    %310 = vmatprep.subr.bf16.mxu0 0
    %311 = vmatpush1.bf16.msra.mxu0 0
    %312 = vmatprep.subr.bf16.mxu0 0
    %313 = vmatpush1.bf16.msra.mxu0 0
    %314 = vmatprep.subr.bf16.mxu0 0
    %315 = vmatpush1.bf16.msra.mxu0 0
    %316 = vmatprep.subr.bf16.mxu0 0
    %317 = vmatpush1.bf16.msra.mxu0 0
    %318 = vmatprep.mubr.bf16.mxu0 0
    %319 = vmatmul.mubr.bf16.gmra.mrb[0].mxu0 %v284
    %v320 = vpop.f32.mrb[0].mxu0
    %v321 = vadd.f32 %v269, %v320
    %v322 = vpop.f32.mrb[0].mxu0
    %v323 = vpop.f32.mrb[0].mxu0
    %v324 = vpop.f32.mrb[0].mxu0
    %325 = vdwg.mxu0
    %326 = vst [vmem:[%s3] sm:$0xff] %v321
    // Predicated region
    $region22: #{forward.1} parent=1 // pred_check
      _
    $region23: #{forward.1} parent=1 // pred_check_branch
      %328 = sbr.rel (0) target = $region25
    $region24: #{forward.1} parent=1 // pred_region
      _
    $region25: #{forward.1} parent=1 // pred_fallthru
      _
    // Predicated region
    $region26: #{forward.1} parent=1 // pred_check
      _
    $region27: #{forward.1} parent=1 // pred_check_branch
      %330 = sbr.rel (0) target = $region29
    $region28: #{forward.1} parent=1 // pred_region
      _
    $region29: #{forward.1} parent=1 // pred_fallthru
      _
    %331 = vsyncpa [#allocation3], 1
    %332 = vsyncpa [#allocation5], 1

</llo_original>
